<compile_context>
chip_gen: v5e
topology: v5e:2x2
jax: 0.10.0
libtpu: 0.0.40
codegen_flags: <defaults>
</compile_context>

<pallas_src>
import math
import functools

import jax
import jax.numpy as jnp
import numpy as np
from jax import lax
from jax.experimental import pallas as pl
from jax.experimental.pallas import tpu as pltpu

C_PAD = 128   # lane-dense padded class dimension for the logits store
S_LANE = 128  # lane multiple used to pad the attention-map trailing dim


def transformer_kernel(idx_ref, embed_ref, pos_ref, wqkv_ref, fcw_ref, linw_ref,
                       bias_ref, out_ref, att_ref, *,
                       seq_len, vocab_size, d_internal, s_pad, inv_scale):
    tb = out_ref.shape[0]                 # sequences handled by this grid step
    d_model = embed_ref.shape[1]
    rows = tb * seq_len

    # ---- fused embedding gather (one-hot MXU matmul) + positional encoding add ----
    # NOTE: fine for the tiny demo vocab; for realistic vocab sizes switch to a
    # scalar-prefetch / manual-DMA row gather so the (V, d_model) table never has to
    # be VMEM-resident (matters most on v7x's 64 MiB VMEM).
    idx = idx_ref[0]                                                    # (1, TB*S) int32
    iota_v = lax.broadcasted_iota(jnp.int32, (vocab_size, rows), 0)     # (V, TB*S)
    onehot = (iota_v == idx).astype(jnp.float32)                        # (V, TB*S)
    x = lax.dot_general(onehot, embed_ref[...],
                        dimension_numbers=(((0,), (0,)), ((), ())),
                        preferred_element_type=jnp.float32)             # (TB*S, D)
    pos = pos_ref[...]                                                  # (S, D)
    if tb > 1:
        pos = jnp.concatenate([pos] * tb, axis=0)                       # (TB*S, D)
    x = x + pos                                                         # PositionalEncoding add

    # ---- fused q/k/v projection: one MXU matmul, M = TB*S, N = 3*d_internal ----
    qkv = jnp.dot(x, wqkv_ref[...], preferred_element_type=jnp.float32)  # (TB*S, 3*d_int)
    q = qkv[:, :d_internal]                  # from w_queries  (reference's crossed naming)
    k = qkv[:, d_internal:2 * d_internal]    # from w_values
    v = qkv[:, 2 * d_internal:]              # from w_keys

    # ---- per-sequence attention (statically unrolled over TB tiny sequences) ----
    pad_cols = s_pad - seq_len
    concat_rows = []
    for b in range(tb):
        sl = slice(b * seq_len, (b + 1) * seq_len)
        qb, kb, vb = q[sl], k[sl], v[sl]                                # (S, d_int)

        # scores = q.T @ k (contract seq axis; no materialized transpose)
        s = lax.dot_general(qb, kb, dimension_numbers=(((0,), (0,)), ((), ())),
                            preferred_element_type=jnp.float32)         # (d_int, d_int)
        s = s * inv_scale                                               # 1/sqrt(d_model)
        s_max = jnp.max(s, axis=-1, keepdims=True)
        e = jnp.exp(s - s_max)
        p = e * pl.reciprocal(jnp.sum(e, axis=-1, keepdims=True), approx=False)

        # att = p @ v.T  (contract dim 1 of both)
        att_b = lax.dot_general(p, vb, dimension_numbers=(((1,), (1,)), ((), ())),
                                preferred_element_type=jnp.float32)     # (d_int, S)
        if pad_cols:
            att_b = jnp.concatenate(
                [att_b, jnp.zeros((d_internal, pad_cols), jnp.float32)], axis=-1)
        att_ref[b] = att_b                                              # lane-dense store

        # concat = att.T computed directly as v @ p.T (no transpose materialized)
        concat_rows.append(
            lax.dot_general(vb, p, dimension_numbers=(((1,), (1,)), ((), ())),
                            preferred_element_type=jnp.float32))        # (S, d_int)

    concat = jnp.concatenate(concat_rows, axis=0) if tb > 1 else concat_rows[0]

    # ---- feed-forward + classifier, flat over all TB*S rows ----
    biases = bias_ref[...]                                              # (2, C_PAD)
    fcb = biases[0:1, :d_internal]                                      # (1, d_int)
    linb = biases[1:2, :]                                               # (1, C_PAD), -1e30 pad
    h = jnp.dot(concat, fcw_ref[...], preferred_element_type=jnp.float32) + fcb
    logits = jnp.dot(h, linw_ref[...], preferred_element_type=jnp.float32) + linb

    # log_softmax; padded class columns carry bias -1e30 so their exp() underflows to 0
    m = jnp.max(logits, axis=-1, keepdims=True)
    z = logits - m
    out = z - jnp.log(jnp.sum(jnp.exp(z), axis=-1, keepdims=True))      # (TB*S, C_PAD)
    out_ref[...] = out.reshape(tb, seq_len, out.shape[-1])              # lane-dense store


def transformer_forward(indices, params, *, d_model):
    B, S = indices.shape
    V = params["embed"].shape[0]
    d_internal = params["wq"].shape[1]
    num_classes = params["lin_w"].shape[0]
    num_positions = params["pos_emb"].shape[0]
    assert S <= num_positions, "sequence length exceeds num_positions"
    assert num_classes <= C_PAD, "num_classes exceeds padded class dimension"

    # Two fat grid steps when possible: on v7x "parallel" puts one step on each
    # TensorCore; on v5e/v6e (serial grid) two steps keep fixed overhead negligible.
    num_grid = 2 if (B >= 2 and B % 2 == 0) else 1
    TB = B // num_grid
    S_PAD = -(-S // S_LANE) * S_LANE

    f32 = jnp.float32
    embed = params["embed"].astype(f32)
    pos_emb = params["pos_emb"].astype(f32)
    # Fused [wq | wv | wk]; the reference's crossed q/k/v naming is preserved downstream.
    wqkv = jnp.concatenate([params["wq"], params["wv"], params["wk"]], axis=1).astype(f32)
    fc_w_t = params["fc_w"].T.astype(f32)
    lin_w_t = jnp.zeros((d_internal, C_PAD), f32).at[:, :num_classes].set(
        params["lin_w"].T.astype(f32))
    # Merged bias block: row 0 = fc bias (first d_internal lanes, rest unused),
    # row 1 = lin bias padded with -1e30 (safe in f32; do NOT cast this to bf16).
    biases = jnp.full((2, C_PAD), -1e30, f32)
    biases = biases.at[0, :].set(0.0).at[0, :d_internal].set(params["fc_b"].astype(f32))
    biases = biases.at[1, :num_classes].set(params["lin_b"].astype(f32))
    idx3 = indices.astype(jnp.int32).reshape(num_grid, 1, TB * S)

    kernel = functools.partial(
        transformer_kernel, seq_len=S, vocab_size=V, d_internal=d_internal,
        s_pad=S_PAD, inv_scale=1.0 / math.sqrt(d_model))

    in_specs = [
        pl.BlockSpec((1, 1, TB * S), lambda b: (b, 0, 0)),           # token ids per step
        pl.BlockSpec((V, d_model), lambda b: (0, 0)),                # embedding table (resident)
        pl.BlockSpec((S, d_model), lambda b: (0, 0)),                # pos_emb[:S] window
        pl.BlockSpec((d_model, 3 * d_internal), lambda b: (0, 0)),   # fused wq|wv|wk
        pl.BlockSpec((d_internal, d_internal), lambda b: (0, 0)),    # fc_w.T
        pl.BlockSpec((d_internal, C_PAD), lambda b: (0, 0)),         # lin_w.T (lane padded)
        pl.BlockSpec((2, C_PAD), lambda b: (0, 0)),                  # merged fc/lin biases
    ]
    out_specs = (
        pl.BlockSpec((TB, S, C_PAD), lambda b: (b, 0, 0)),           # log-probs (lane dense)
        pl.BlockSpec((TB, d_internal, S_PAD), lambda b: (b, 0, 0)),  # attention map (lane dense)
    )

    # VMEM budget from the actual (tile-padded, double-buffered) block sizes + headroom.
    def padded_bytes(shape, itemsize=4):
        dims = list(shape)
        dims[-1] = -(-dims[-1] // 128) * 128
        dims[-2] = -(-dims[-2] // 8) * 8
        n = 1
        for d in dims:
            n *= d
        return n * itemsize

    block_shapes = [(1, 1, TB * S), (V, d_model), (S, d_model), (d_model, 3 * d_internal),
                    (d_internal, d_internal), (d_internal, C_PAD), (2, C_PAD),
                    (TB, S, C_PAD), (TB, d_internal, S_PAD)]
    vmem_limit = int(min(128 * 1024 * 1024,
                         2 * sum(padded_bytes(s) for s in block_shapes) + (8 << 20)))

    flops = 2 * B * (S * V * d_model + 3 * S * d_model * d_internal
                     + 4 * S * d_internal * d_internal + S * d_internal * C_PAD)
    transcend = B * (d_internal * d_internal + S * C_PAD + S)
    bytes_accessed = 4 * (idx3.size + embed.size + S * d_model + wqkv.size
                          + fc_w_t.size + lin_w_t.size + biases.size
                          + B * S * C_PAD + B * d_internal * S_PAD)

    out_pad, att_pad = pl.pallas_call(
        kernel,
        out_shape=(jax.ShapeDtypeStruct((B, S, C_PAD), f32),
                   jax.ShapeDtypeStruct((B, d_internal, S_PAD), f32)),
        grid_spec=pltpu.PrefetchScalarGridSpec(
            num_scalar_prefetch=0, grid=(num_grid,),
            in_specs=in_specs, out_specs=out_specs),
        compiler_params=pltpu.CompilerParams(
            dimension_semantics=("parallel",),
            vmem_limit_bytes=vmem_limit),
        cost_estimate=pl.CostEstimate(flops=flops, transcendentals=transcend,
                                      bytes_accessed=bytes_accessed),
    )(idx3, embed, pos_emb, wqkv, fc_w_t, lin_w_t, biases)

    return out_pad[:, :, :num_classes], att_pad[:, :, :S]


def reference_forward(indices, params, *, d_model):
    """Pure-JAX mirror of the PyTorch reference (batched via vmap), for checking."""
    def one(seq_idx):
        x = params["embed"][seq_idx] + params["pos_emb"][:seq_idx.shape[0]]
        q = x @ params["wq"]
        k = x @ params["wv"]
        v = x @ params["wk"]
        s = (q.T @ k) / math.sqrt(d_model)
        p = jax.nn.softmax(s, axis=-1)
        att = p @ v.T
        concat = att.T
        h = concat @ params["fc_w"].T + params["fc_b"]
        logits = h @ params["lin_w"].T + params["lin_b"]
        return jax.nn.log_softmax(logits, axis=-1), att
    return jax.vmap(one)(indices)


if __name__ == "__main__":
    vocab_size, num_positions = 10, 20
    d_model, d_internal, num_classes = 32, 16, 3
    batch, seq_len = 4, 8  # seq_len <= num_positions

    key = jax.random.PRNGKey(0)
    ks = jax.random.split(key, 8)
    params = {
        "embed":   0.1 * jax.random.normal(ks[0], (vocab_size, d_model), jnp.float32),
        "pos_emb": 0.1 * jax.random.normal(ks[1], (num_positions, d_model), jnp.float32),
        # nn.Linear(d_internal, d_model).weight -> [d_model, d_internal]
        "wq":      0.1 * jax.random.normal(ks[2], (d_model, d_internal), jnp.float32),
        "wv":      0.1 * jax.random.normal(ks[3], (d_model, d_internal), jnp.float32),
        "wk":      0.1 * jax.random.normal(ks[4], (d_model, d_internal), jnp.float32),
        # nn.Linear(d_internal, d_internal)
        "fc_w":    0.1 * jax.random.normal(ks[5], (d_internal, d_internal), jnp.float32),
        "fc_b":    0.01 * jnp.ones((d_internal,), jnp.float32),
        # nn.Linear(d_internal, num_classes)
        "lin_w":   0.1 * jax.random.normal(ks[6], (num_classes, d_internal), jnp.float32),
        "lin_b":   jnp.zeros((num_classes,), jnp.float32),
    }
    indices = jax.random.randint(ks[7], (batch, seq_len), 0, vocab_size)

    out, att = transformer_forward(indices, params, d_model=d_model)
    jax.block_until_ready((out, att))

    ref_out, ref_att = reference_forward(indices, params, d_model=d_model)
    np.testing.assert_allclose(np.asarray(out), np.asarray(ref_out), atol=1e-5, rtol=1e-5)
    np.testing.assert_allclose(np.asarray(att), np.asarray(ref_att), atol=1e-5, rtol=1e-5)

    print("KERNEL_OK")
</pallas_src>

<mosaic_0001>
module attributes {stable_mosaic.version = 11 : i64} {
  func.func @transformer_kernel(%arg0: i32, %arg1: memref<1x1x16xi32, #tpu.memory_space<vmem>>, %arg2: memref<10x32xf32, #tpu.memory_space<vmem>>, %arg3: memref<8x32xf32, #tpu.memory_space<vmem>>, %arg4: memref<32x48xf32, #tpu.memory_space<vmem>>, %arg5: memref<16x16xf32, #tpu.memory_space<vmem>>, %arg6: memref<16x128xf32, #tpu.memory_space<vmem>>, %arg7: memref<2x128xf32, #tpu.memory_space<vmem>>, %arg8: memref<2x8x128xf32, #tpu.memory_space<vmem>>, %arg9: memref<2x16x128xf32, #tpu.memory_space<vmem>>) attributes {dimension_semantics = [#tpu.dimension_semantics<parallel>], iteration_bounds = array<i64: 2>, scalar_prefetch = 0 : i64, scratch_operands = 0 : i64, tpu.core_type = #tpu.core_type<tc>, window_params = [{transform_indices = @transform_0, window_bounds = array<i64: 1, 1, 16>}, {pipeline_mode = #tpu.pipeline_mode<synchronous>, transform_indices = @transform_1, window_bounds = array<i64: 10, 32>}, {transform_indices = @transform_2, window_bounds = array<i64: 8, 32>}, {pipeline_mode = #tpu.pipeline_mode<synchronous>, transform_indices = @transform_3, window_bounds = array<i64: 32, 48>}, {pipeline_mode = #tpu.pipeline_mode<synchronous>, transform_indices = @transform_4, window_bounds = array<i64: 16, 16>}, {pipeline_mode = #tpu.pipeline_mode<synchronous>, transform_indices = @transform_5, window_bounds = array<i64: 16, 128>}, {pipeline_mode = #tpu.pipeline_mode<synchronous>, transform_indices = @transform_6, window_bounds = array<i64: 2, 128>}, {transform_indices = @transform_7, window_bounds = array<i64: 2, 8, 128>}, {transform_indices = @transform_8, window_bounds = array<i64: 2, 16, 128>}]} {
    %c0 = arith.constant 0 : index
    %c0_0 = arith.constant 0 : index
    %c0_1 = arith.constant 0 : index
    %0 = vector.load %arg1[%c0, %c0_0, %c0_1] : memref<1x1x16xi32, #tpu.memory_space<vmem>>, vector<1x1x16xi32>
    %1 = vector.shape_cast %0 : vector<1x1x16xi32> to vector<1x16xi32>
    %2 = tpu.iota {dimensions = array<i32: 0>} : vector<10x16xi32>
    %3 = vector.broadcast %1 : vector<1x16xi32> to vector<10x16xi32>
    %4 = arith.cmpi eq, %2, %3 : vector<10x16xi32>
    %5 = arith.extui %4 : vector<10x16xi1> to vector<10x16xi32>
    %6 = arith.sitofp %5 : vector<10x16xi32> to vector<10x16xf32>
    %c0_2 = arith.constant 0 : index
    %c0_3 = arith.constant 0 : index
    %7 = vector.load %arg2[%c0_2, %c0_3] : memref<10x32xf32, #tpu.memory_space<vmem>>, vector<10x32xf32>
    %cst = arith.constant dense<0.000000e+00> : vector<16x32xf32>
    %8 = tpu.matmul %6, %7, %cst {dimension_numbers = #tpu.dot_dimension_numbers<[0], [0], [1], [1], [0, 1, 1, 1], [], []>} : vector<10x16xf32>, vector<10x32xf32>, vector<16x32xf32> -> vector<16x32xf32>
    %c0_4 = arith.constant 0 : index
    %c0_5 = arith.constant 0 : index
    %9 = vector.load %arg3[%c0_4, %c0_5] : memref<8x32xf32, #tpu.memory_space<vmem>>, vector<8x32xf32>
    %10 = tpu.concatenate %9, %9 in 0 : vector<8x32xf32>, vector<8x32xf32> -> vector<16x32xf32>
    %11 = arith.addf %8, %10 : vector<16x32xf32>
    %c0_6 = arith.constant 0 : index
    %c0_7 = arith.constant 0 : index
    %12 = vector.load %arg4[%c0_6, %c0_7] : memref<32x48xf32, #tpu.memory_space<vmem>>, vector<32x48xf32>
    %cst_8 = arith.constant dense<0.000000e+00> : vector<16x48xf32>
    %13 = tpu.matmul %11, %12, %cst_8 {dimension_numbers = #tpu.dot_dimension_numbers<[1], [0], [0], [1], [0, 0, 1, 1], [], []>} : vector<16x32xf32>, vector<32x48xf32>, vector<16x48xf32> -> vector<16x48xf32>
    %14 = vector.extract_strided_slice %13 {offsets = [0, 0], sizes = [16, 16], strides = [1, 1]} : vector<16x48xf32> to vector<16x16xf32>
    %15 = vector.extract_strided_slice %13 {offsets = [0, 16], sizes = [16, 16], strides = [1, 1]} : vector<16x48xf32> to vector<16x16xf32>
    %16 = vector.extract_strided_slice %13 {offsets = [0, 32], sizes = [16, 16], strides = [1, 1]} : vector<16x48xf32> to vector<16x16xf32>
    %17 = vector.extract_strided_slice %14 {offsets = [0, 0], sizes = [8, 16], strides = [1, 1]} : vector<16x16xf32> to vector<8x16xf32>
    %18 = vector.extract_strided_slice %15 {offsets = [0, 0], sizes = [8, 16], strides = [1, 1]} : vector<16x16xf32> to vector<8x16xf32>
    %19 = vector.extract_strided_slice %16 {offsets = [0, 0], sizes = [8, 16], strides = [1, 1]} : vector<16x16xf32> to vector<8x16xf32>
    %cst_9 = arith.constant dense<0.000000e+00> : vector<16x16xf32>
    %20 = tpu.matmul %17, %18, %cst_9 {dimension_numbers = #tpu.dot_dimension_numbers<[0], [0], [1], [1], [0, 1, 1, 1], [], []>} : vector<8x16xf32>, vector<8x16xf32>, vector<16x16xf32> -> vector<16x16xf32>
    %cst_10 = arith.constant 0.176776692 : f32
    %21 = vector.broadcast %cst_10 : f32 to vector<16x16xf32>
    %22 = arith.mulf %20, %21 : vector<16x16xf32>
    %cst_11 = arith.constant dense<0xFF800000> : vector<16xf32>
    %23 = vector.multi_reduction <maximumf>, %22, %cst_11 [1] : vector<16x16xf32> to vector<16xf32>
    %24 = vector.shape_cast %23 : vector<16xf32> to vector<16x1xf32>
    %25 = vector.broadcast %24 : vector<16x1xf32> to vector<16x16xf32>
    %26 = arith.subf %22, %25 : vector<16x16xf32>
    %27 = math.exp %26 : vector<16x16xf32>
    %cst_12 = arith.constant dense<0.000000e+00> : vector<16xf32>
    %28 = vector.multi_reduction <add>, %27, %cst_12 [1] : vector<16x16xf32> to vector<16xf32>
    %29 = vector.shape_cast %28 : vector<16xf32> to vector<16x1xf32>
    %30 = tpu.reciprocal %29 : vector<16x1xf32> -> vector<16x1xf32>
    %31 = vector.broadcast %30 : vector<16x1xf32> to vector<16x16xf32>
    %32 = arith.mulf %27, %31 : vector<16x16xf32>
    %cst_13 = arith.constant dense<0.000000e+00> : vector<16x8xf32>
    %33 = tpu.matmul %32, %19, %cst_13 {dimension_numbers = #tpu.dot_dimension_numbers<[1], [1], [0], [0], [0, 0, 1, 0], [], []>} : vector<16x16xf32>, vector<8x16xf32>, vector<16x8xf32> -> vector<16x8xf32>
    %cst_14 = arith.constant 0.000000e+00 : f32
    %34 = vector.broadcast %cst_14 : f32 to vector<16x120xf32>
    %35 = tpu.concatenate %33, %34 in 1 : vector<16x8xf32>, vector<16x120xf32> -> vector<16x128xf32>
    %c0_15 = arith.constant 0 : index
    %c0_16 = arith.constant 0 : index
    %c0_17 = arith.constant 0 : index
    %36 = vector.load %arg9[%c0_15, %c0_16, %c0_17] : memref<2x16x128xf32, #tpu.memory_space<vmem>>, vector<1x16x128xf32>
    %37 = vector.shape_cast %36 : vector<1x16x128xf32> to vector<16x128xf32>
    %38 = vector.shape_cast %35 : vector<16x128xf32> to vector<1x16x128xf32>
    tpu.vector_store %arg9[%c0_15, %c0_16, %c0_17], %38 {strides = array<i32>} : memref<2x16x128xf32, #tpu.memory_space<vmem>>, vector<1x16x128xf32>,
    %cst_18 = arith.constant dense<0.000000e+00> : vector<8x16xf32>
    %39 = tpu.matmul %19, %32, %cst_18 {dimension_numbers = #tpu.dot_dimension_numbers<[1], [1], [0], [0], [0, 0, 1, 0], [], []>} : vector<8x16xf32>, vector<16x16xf32>, vector<8x16xf32> -> vector<8x16xf32>
    %40 = vector.extract_strided_slice %14 {offsets = [8, 0], sizes = [8, 16], strides = [1, 1]} : vector<16x16xf32> to vector<8x16xf32>
    %41 = vector.extract_strided_slice %15 {offsets = [8, 0], sizes = [8, 16], strides = [1, 1]} : vector<16x16xf32> to vector<8x16xf32>
    %42 = vector.extract_strided_slice %16 {offsets = [8, 0], sizes = [8, 16], strides = [1, 1]} : vector<16x16xf32> to vector<8x16xf32>
    %cst_19 = arith.constant dense<0.000000e+00> : vector<16x16xf32>
    %43 = tpu.matmul %40, %41, %cst_19 {dimension_numbers = #tpu.dot_dimension_numbers<[0], [0], [1], [1], [0, 1, 1, 1], [], []>} : vector<8x16xf32>, vector<8x16xf32>, vector<16x16xf32> -> vector<16x16xf32>
    %cst_20 = arith.constant 0.176776692 : f32
    %44 = vector.broadcast %cst_20 : f32 to vector<16x16xf32>
    %45 = arith.mulf %43, %44 : vector<16x16xf32>
    %cst_21 = arith.constant dense<0xFF800000> : vector<16xf32>
    %46 = vector.multi_reduction <maximumf>, %45, %cst_21 [1] : vector<16x16xf32> to vector<16xf32>
    %47 = vector.shape_cast %46 : vector<16xf32> to vector<16x1xf32>
    %48 = vector.broadcast %47 : vector<16x1xf32> to vector<16x16xf32>
    %49 = arith.subf %45, %48 : vector<16x16xf32>
    %50 = math.exp %49 : vector<16x16xf32>
    %cst_22 = arith.constant dense<0.000000e+00> : vector<16xf32>
    %51 = vector.multi_reduction <add>, %50, %cst_22 [1] : vector<16x16xf32> to vector<16xf32>
    %52 = vector.shape_cast %51 : vector<16xf32> to vector<16x1xf32>
    %53 = tpu.reciprocal %52 : vector<16x1xf32> -> vector<16x1xf32>
    %54 = vector.broadcast %53 : vector<16x1xf32> to vector<16x16xf32>
    %55 = arith.mulf %50, %54 : vector<16x16xf32>
    %cst_23 = arith.constant dense<0.000000e+00> : vector<16x8xf32>
    %56 = tpu.matmul %55, %42, %cst_23 {dimension_numbers = #tpu.dot_dimension_numbers<[1], [1], [0], [0], [0, 0, 1, 0], [], []>} : vector<16x16xf32>, vector<8x16xf32>, vector<16x8xf32> -> vector<16x8xf32>
    %cst_24 = arith.constant 0.000000e+00 : f32
    %57 = vector.broadcast %cst_24 : f32 to vector<16x120xf32>
    %58 = tpu.concatenate %56, %57 in 1 : vector<16x8xf32>, vector<16x120xf32> -> vector<16x128xf32>
    %c1 = arith.constant 1 : index
    %c0_25 = arith.constant 0 : index
    %c0_26 = arith.constant 0 : index
    %59 = vector.load %arg9[%c1, %c0_25, %c0_26] : memref<2x16x128xf32, #tpu.memory_space<vmem>>, vector<1x16x128xf32>
    %60 = vector.shape_cast %59 : vector<1x16x128xf32> to vector<16x128xf32>
    %61 = vector.shape_cast %58 : vector<16x128xf32> to vector<1x16x128xf32>
    tpu.vector_store %arg9[%c1, %c0_25, %c0_26], %61 {strides = array<i32>} : memref<2x16x128xf32, #tpu.memory_space<vmem>>, vector<1x16x128xf32>,
    %cst_27 = arith.constant dense<0.000000e+00> : vector<8x16xf32>
    %62 = tpu.matmul %42, %55, %cst_27 {dimension_numbers = #tpu.dot_dimension_numbers<[1], [1], [0], [0], [0, 0, 1, 0], [], []>} : vector<8x16xf32>, vector<16x16xf32>, vector<8x16xf32> -> vector<8x16xf32>
    %63 = tpu.concatenate %39, %62 in 0 : vector<8x16xf32>, vector<8x16xf32> -> vector<16x16xf32>
    %c0_28 = arith.constant 0 : index
    %c0_29 = arith.constant 0 : index
    %64 = vector.load %arg7[%c0_28, %c0_29] : memref<2x128xf32, #tpu.memory_space<vmem>>, vector<2x128xf32>
    %65 = vector.extract_strided_slice %64 {offsets = [0, 0], sizes = [1, 16], strides = [1, 1]} : vector<2x128xf32> to vector<1x16xf32>
    %66 = vector.extract_strided_slice %64 {offsets = [1, 0], sizes = [1, 128], strides = [1, 1]} : vector<2x128xf32> to vector<1x128xf32>
    %c0_30 = arith.constant 0 : index
    %c0_31 = arith.constant 0 : index
    %67 = vector.load %arg5[%c0_30, %c0_31] : memref<16x16xf32, #tpu.memory_space<vmem>>, vector<16x16xf32>
    %cst_32 = arith.constant dense<0.000000e+00> : vector<16x16xf32>
    %68 = tpu.matmul %63, %67, %cst_32 {dimension_numbers = #tpu.dot_dimension_numbers<[1], [0], [0], [1], [0, 0, 1, 1], [], []>} : vector<16x16xf32>, vector<16x16xf32>, vector<16x16xf32> -> vector<16x16xf32>
    %69 = vector.broadcast %65 : vector<1x16xf32> to vector<16x16xf32>
    %70 = arith.addf %68, %69 : vector<16x16xf32>
    %c0_33 = arith.constant 0 : index
    %c0_34 = arith.constant 0 : index
    %71 = vector.load %arg6[%c0_33, %c0_34] : memref<16x128xf32, #tpu.memory_space<vmem>>, vector<16x128xf32>
    %cst_35 = arith.constant dense<0.000000e+00> : vector<16x128xf32>
    %72 = tpu.matmul %70, %71, %cst_35 {dimension_numbers = #tpu.dot_dimension_numbers<[1], [0], [0], [1], [0, 0, 1, 1], [], []>} : vector<16x16xf32>, vector<16x128xf32>, vector<16x128xf32> -> vector<16x128xf32>
    %73 = vector.broadcast %66 : vector<1x128xf32> to vector<16x128xf32>
    %74 = arith.addf %72, %73 : vector<16x128xf32>
    %cst_36 = arith.constant dense<0xFF800000> : vector<16xf32>
    %75 = vector.multi_reduction <maximumf>, %74, %cst_36 [1] : vector<16x128xf32> to vector<16xf32>
    %76 = vector.shape_cast %75 : vector<16xf32> to vector<16x1xf32>
    %77 = vector.broadcast %76 : vector<16x1xf32> to vector<16x128xf32>
    %78 = arith.subf %74, %77 : vector<16x128xf32>
    %79 = math.exp %78 : vector<16x128xf32>
    %cst_37 = arith.constant dense<0.000000e+00> : vector<16xf32>
    %80 = vector.multi_reduction <add>, %79, %cst_37 [1] : vector<16x128xf32> to vector<16xf32>
    %81 = vector.shape_cast %80 : vector<16xf32> to vector<16x1xf32>
    %82 = math.log %81 : vector<16x1xf32>
    %83 = vector.broadcast %82 : vector<16x1xf32> to vector<16x128xf32>
    %84 = arith.subf %78, %83 : vector<16x128xf32>
    %85 = vector.shape_cast %84 : vector<16x128xf32> to vector<2x8x128xf32>
    %c0_38 = arith.constant 0 : index
    %c0_39 = arith.constant 0 : index
    %c0_40 = arith.constant 0 : index
    %86 = vector.load %arg8[%c0_38, %c0_39, %c0_40] : memref<2x8x128xf32, #tpu.memory_space<vmem>>, vector<2x8x128xf32>
    tpu.vector_store %arg8[%c0_38, %c0_39, %c0_40], %85 {strides = array<i32>} : memref<2x8x128xf32, #tpu.memory_space<vmem>>, vector<2x8x128xf32>,
    return
  }
  func.func @transform_0(%arg0: i32) -> (i32, i32, i32) {
    %c0_i32 = arith.constant 0 : i32
    %c0_i32_0 = arith.constant 0 : i32
    %c0_i32_1 = arith.constant 0 : i32
    return %arg0, %c0_i32, %c0_i32_0 : i32, i32, i32
  }
  func.func @transform_1(%arg0: i32) -> (i32, i32) {
    %c0_i32 = arith.constant 0 : i32
    %c0_i32_0 = arith.constant 0 : i32
    %c0_i32_1 = arith.constant 0 : i32
    return %c0_i32, %c0_i32_0 : i32, i32
  }
  func.func @transform_2(%arg0: i32) -> (i32, i32) {
    %c0_i32 = arith.constant 0 : i32
    %c0_i32_0 = arith.constant 0 : i32
    %c0_i32_1 = arith.constant 0 : i32
    return %c0_i32, %c0_i32_0 : i32, i32
  }
  func.func @transform_3(%arg0: i32) -> (i32, i32) {
    %c0_i32 = arith.constant 0 : i32
    %c0_i32_0 = arith.constant 0 : i32
    %c0_i32_1 = arith.constant 0 : i32
    return %c0_i32, %c0_i32_0 : i32, i32
  }
  func.func @transform_4(%arg0: i32) -> (i32, i32) {
    %c0_i32 = arith.constant 0 : i32
    %c0_i32_0 = arith.constant 0 : i32
    %c0_i32_1 = arith.constant 0 : i32
    return %c0_i32, %c0_i32_0 : i32, i32
  }
  func.func @transform_5(%arg0: i32) -> (i32, i32) {
    %c0_i32 = arith.constant 0 : i32
    %c0_i32_0 = arith.constant 0 : i32
    %c0_i32_1 = arith.constant 0 : i32
    return %c0_i32, %c0_i32_0 : i32, i32
  }
  func.func @transform_6(%arg0: i32) -> (i32, i32) {
    %c0_i32 = arith.constant 0 : i32
    %c0_i32_0 = arith.constant 0 : i32
    %c0_i32_1 = arith.constant 0 : i32
    return %c0_i32, %c0_i32_0 : i32, i32
  }
  func.func @transform_7(%arg0: i32) -> (i32, i32, i32) {
    %c0_i32 = arith.constant 0 : i32
    %c0_i32_0 = arith.constant 0 : i32
    %c0_i32_1 = arith.constant 0 : i32
    return %arg0, %c0_i32, %c0_i32_0 : i32, i32, i32
  }
  func.func @transform_8(%arg0: i32) -> (i32, i32, i32) {
    %c0_i32 = arith.constant 0 : i32
    %c0_i32_0 = arith.constant 0 : i32
    %c0_i32_1 = arith.constant 0 : i32
    return %arg0, %c0_i32, %c0_i32_0 : i32, i32, i32
  }
}

</mosaic_0001>

<llo_original>
// kernel: tpu_custom_call.1
$region0: #{tpu_custom_call.1}
  #allocation0 [shape = 'u32[]', space=smem, size = 0x4, offset = 0x4, fixed_abs, tag = 'smem constant byte address 0x4 - core index']
  #allocation1 [shape = 'u32[72,128]{1,0:T(1,128)}', space=vmem, size = 0x9000, scoped, tag = 'internal scratch']
  %s0 = inlined_call_operand.hbm [shape: s32[2,1,16], index: 0, kind: input, shape index: {}]
  %s1 = inlined_call_operand.hbm [shape: f32[10,32], index: 1, kind: input, shape index: {}]
  %s2 = inlined_call_operand.hbm [shape: f32[20,32], index: 2, kind: input, shape index: {}]
  %s3 = inlined_call_operand.hbm [shape: f32[32,48], index: 3, kind: input, shape index: {}]
  %s4 = inlined_call_operand.hbm [shape: f32[16,16], index: 4, kind: input, shape index: {}]
  %s5 = inlined_call_operand.hbm [shape: f32[16,128], index: 5, kind: input, shape index: {}]
  %s6 = inlined_call_operand.vmem [shape: f32[2,128], index: 6, kind: input, shape index: {}]
  %s7 = inlined_call_operand.hbm [shape: f32[4,8,128], index: 7, kind: output, shape index: {0}]
  %s8 = inlined_call_operand.hbm [shape: f32[4,16,128], index: 8, kind: output, shape index: {1}]
  %9 = xla_tuple %s7, %s8
  %s10 = sld [smem:[#allocation0]]
  $region93: #{tpu_custom_call.1} parent=0
    _
  %s12 = ssub.s32 1, %s10
  %s13 = scalar_select 0, %s12, %s10
  $region1: #{tpu_custom_call.1} parent=0
    #allocation2 [shape = 'u8[1024]{0}', space=vmem, size = 0x400, scoped, tag = 'input window, operand 0']
    #allocation3 [shape = 's32[2]{0}', space=sflag, size = 0x8, scoped, tag = 'scoped memory for tpu_custom_call.1']
    #allocation4 [shape = 's32[2]{0}', space=sflag, size = 0x8, scoped, tag = 'scoped memory for tpu_custom_call.1']
    #allocation5 [shape = 'u8[8192]{0}', space=vmem, size = 0x2000, scoped, tag = 'input window, operand 1, single buffered']
    #allocation6 [shape = 's32[1]{0}', space=sflag, size = 0x4, scoped, tag = 'scoped memory for tpu_custom_call.1']
    #allocation7 [shape = 'u8[4096]{0}', space=vmem, size = 0x1000, scoped, tag = 'input window, operand 2, single buffered']
    #allocation8 [shape = 'u8[16384]{0}', space=vmem, size = 0x4000, scoped, tag = 'input window, operand 3, single buffered']
    #allocation9 [shape = 's32[1]{0}', space=sflag, size = 0x4, scoped, tag = 'scoped memory for tpu_custom_call.1']
    #allocation10 [shape = 'u8[8192]{0}', space=vmem, size = 0x2000, scoped, tag = 'input window, operand 4, single buffered']
    #allocation11 [shape = 'u8[8192]{0}', space=vmem, size = 0x2000, scoped, tag = 'input window, operand 5, single buffered']
    #allocation12 [shape = 's32[1]{0}', space=sflag, size = 0x4, scoped, tag = 'scoped memory for tpu_custom_call.1']
    #allocation13 [shape = 'u8[16384]{0}', space=vmem, size = 0x4000, scoped, tag = 'output window, operand 0']
    #allocation14 [shape = 'u8[32768]{0}', space=vmem, size = 0x8000, scoped, tag = 'output window, operand 1']
    #allocation15 [shape = 's32[2]{0}', space=sflag, size = 0x8, scoped, tag = 'scoped memory for tpu_custom_call.1']
    %14 = vsyncpa [#allocation3], 0
    %s15 = scalar_lea.sflag [#allocation3], 1
    %16 = vsyncpa %s15, 0
    %17 = vsyncpa [#allocation6], 0
    %18 = vsyncpa [#allocation9], 0
    %19 = vsyncpa [#allocation12], 0
    %20 = vsyncpa [#allocation4], 0
    %s21 = scalar_lea.sflag [#allocation4], 1
    %22 = vsyncpa %s21, 0
    %23 = vsyncpa [#allocation15], 0
    %s24 = scalar_lea.sflag [#allocation15], 1
    %25 = vsyncpa %s24, 0
    loop: start=0, step=1, limit=4
    $region2: #{tpu_custom_call.1} parent=1 // loop_pre_header
      _
    $region3: #{tpu_custom_call.1} parent=1 // loop_header
      %s27 = sphi 0, %s31
      %p28 = scmp.ge.s32.totalorder %s27, 4
      %s37 = sphi 0, %s39
      %s40 = sphi 0, %s37
      %s41 = sphi 0, %s40
      %s57 = sphi 0, %s41
      %s61 = sphi 0, %s61
      %s63 = sphi 0, %s61
      %s64 = sphi 0, %s63
      %s78 = sphi 0, %s64
      %s82 = sphi 0, %s82
      %s84 = sphi 0, %s82
      %s85 = sphi 0, %s84
      %s99 = sphi 0, %s85
      %s103 = sphi 0, %s103
      %s105 = sphi 0, %s103
      %s106 = sphi 0, %s105
      %s120 = sphi 0, %s106
      %s124 = sphi 0, %s124
      %s126 = sphi 0, %s124
      %s127 = sphi 0, %s126
      %s141 = sphi 0, %s127
      %s145 = sphi 0, %s145
      %s147 = sphi 0, %s145
      %s148 = sphi 0, %s147
      %s162 = sphi 0, %s148
      %s166 = sphi 0, %s166
      %s168 = sphi 0, %s166
      %s169 = sphi 0, %s168
      %s183 = sphi 0, %s169
      %s189 = sphi 0, %s191
      %s192 = sphi 0, %s189
      %s193 = sphi 0, %s192
      %s209 = sphi 0, %s193
      %s215 = sphi 0, %s217
      %s218 = sphi 0, %s215
      %s219 = sphi 0, %s218
      %s235 = sphi 0, %s219
    $region4: #{tpu_custom_call.1} parent=1 // loop_header_branch
      %30 = sbr.rel (%p28) target = $region8
    $region5: #{tpu_custom_call.1} parent=1 // loop_body
      %s32 = ssub.s32 %s27, 1
      %s33 = ssub.s32 %s27, 2
      %s34 = sadd.s32 %s27, 1
      %s35 = ssub.s32 %s27, %s34
      %p36 = scmp.eq.s32.totalorder %s35, 0
      %s38 = sadd.s32 %s37, 1
      %s39 = scalar_select %p36, %s37, %s38
      %p42 = pneg %p36
      %p43 = scmp.eq.s32.totalorder %s27, 1
      %p44 = por %p42, %p43
      %p45 = scmp.ne.s32.totalorder %s37, %s40
      %p46 = scmp.eq.s32.totalorder %s27, 0
      %p47 = por %p45, %p46
      %p48 = scmp.ne.s32.totalorder %s37, %s40
      %p49 = scmp.eq.s32.totalorder %s32, 1
      %p50 = por %p48, %p49
      %p51 = scmp.ne.s32.totalorder %s40, %s41
      %p52 = scmp.eq.s32.totalorder %s32, 0
      %p53 = por %p51, %p52
      %p54 = scmp.ne.s32.totalorder %s40, %s41
      %p55 = scmp.eq.s32.totalorder %s33, 1
      %p56 = por %p54, %p55
      %p58 = scmp.ne.s32.totalorder %s41, %s57
      %p59 = scmp.eq.s32.totalorder %s33, 0
      %p60 = por %p58, %p59
      %s62 = sadd.s32 %s61, 1
      %p65 = scmp.eq.s32.totalorder %s27, 1
      %p66 = scmp.ne.s32.totalorder %s61, %s63
      %p67 = scmp.eq.s32.totalorder %s27, 0
      %p68 = por %p66, %p67
      %p69 = scmp.ne.s32.totalorder %s61, %s63
      %p70 = scmp.eq.s32.totalorder %s32, 1
      %p71 = por %p69, %p70
      %p72 = scmp.ne.s32.totalorder %s63, %s64
      %p73 = scmp.eq.s32.totalorder %s32, 0
      %p74 = por %p72, %p73
      %p75 = scmp.ne.s32.totalorder %s63, %s64
      %p76 = scmp.eq.s32.totalorder %s33, 1
      %p77 = por %p75, %p76
      %p79 = scmp.ne.s32.totalorder %s64, %s78
      %p80 = scmp.eq.s32.totalorder %s33, 0
      %p81 = por %p79, %p80
      %s83 = sadd.s32 %s82, 1
      %p86 = scmp.eq.s32.totalorder %s27, 1
      %p87 = scmp.ne.s32.totalorder %s82, %s84
      %p88 = scmp.eq.s32.totalorder %s27, 0
      %p89 = por %p87, %p88
      %p90 = scmp.ne.s32.totalorder %s82, %s84
      %p91 = scmp.eq.s32.totalorder %s32, 1
      %p92 = por %p90, %p91
      %p93 = scmp.ne.s32.totalorder %s84, %s85
      %p94 = scmp.eq.s32.totalorder %s32, 0
      %p95 = por %p93, %p94
      %p96 = scmp.ne.s32.totalorder %s84, %s85
      %p97 = scmp.eq.s32.totalorder %s33, 1
      %p98 = por %p96, %p97
      %p100 = scmp.ne.s32.totalorder %s85, %s99
      %p101 = scmp.eq.s32.totalorder %s33, 0
      %p102 = por %p100, %p101
      %s104 = sadd.s32 %s103, 1
      %p107 = scmp.eq.s32.totalorder %s27, 1
      %p108 = scmp.ne.s32.totalorder %s103, %s105
      %p109 = scmp.eq.s32.totalorder %s27, 0
      %p110 = por %p108, %p109
      %p111 = scmp.ne.s32.totalorder %s103, %s105
      %p112 = scmp.eq.s32.totalorder %s32, 1
      %p113 = por %p111, %p112
      %p114 = scmp.ne.s32.totalorder %s105, %s106
      %p115 = scmp.eq.s32.totalorder %s32, 0
      %p116 = por %p114, %p115
      %p117 = scmp.ne.s32.totalorder %s105, %s106
      %p118 = scmp.eq.s32.totalorder %s33, 1
      %p119 = por %p117, %p118
      %p121 = scmp.ne.s32.totalorder %s106, %s120
      %p122 = scmp.eq.s32.totalorder %s33, 0
      %p123 = por %p121, %p122
      %s125 = sadd.s32 %s124, 1
      %p128 = scmp.eq.s32.totalorder %s27, 1
      %p129 = scmp.ne.s32.totalorder %s124, %s126
      %p130 = scmp.eq.s32.totalorder %s27, 0
      %p131 = por %p129, %p130
      %p132 = scmp.ne.s32.totalorder %s124, %s126
      %p133 = scmp.eq.s32.totalorder %s32, 1
      %p134 = por %p132, %p133
      %p135 = scmp.ne.s32.totalorder %s126, %s127
      %p136 = scmp.eq.s32.totalorder %s32, 0
      %p137 = por %p135, %p136
      %p138 = scmp.ne.s32.totalorder %s126, %s127
      %p139 = scmp.eq.s32.totalorder %s33, 1
      %p140 = por %p138, %p139
      %p142 = scmp.ne.s32.totalorder %s127, %s141
      %p143 = scmp.eq.s32.totalorder %s33, 0
      %p144 = por %p142, %p143
      %s146 = sadd.s32 %s145, 1
      %p149 = scmp.eq.s32.totalorder %s27, 1
      %p150 = scmp.ne.s32.totalorder %s145, %s147
      %p151 = scmp.eq.s32.totalorder %s27, 0
      %p152 = por %p150, %p151
      %p153 = scmp.ne.s32.totalorder %s145, %s147
      %p154 = scmp.eq.s32.totalorder %s32, 1
      %p155 = por %p153, %p154
      %p156 = scmp.ne.s32.totalorder %s147, %s148
      %p157 = scmp.eq.s32.totalorder %s32, 0
      %p158 = por %p156, %p157
      %p159 = scmp.ne.s32.totalorder %s147, %s148
      %p160 = scmp.eq.s32.totalorder %s33, 1
      %p161 = por %p159, %p160
      %p163 = scmp.ne.s32.totalorder %s148, %s162
      %p164 = scmp.eq.s32.totalorder %s33, 0
      %p165 = por %p163, %p164
      %s167 = sadd.s32 %s166, 1
      %p170 = scmp.eq.s32.totalorder %s27, 1
      %p171 = scmp.ne.s32.totalorder %s166, %s168
      %p172 = scmp.eq.s32.totalorder %s27, 0
      %p173 = por %p171, %p172
      %p174 = scmp.ne.s32.totalorder %s166, %s168
      %p175 = scmp.eq.s32.totalorder %s32, 1
      %p176 = por %p174, %p175
      %p177 = scmp.ne.s32.totalorder %s168, %s169
      %p178 = scmp.eq.s32.totalorder %s32, 0
      %p179 = por %p177, %p178
      %p180 = scmp.ne.s32.totalorder %s168, %s169
      %p181 = scmp.eq.s32.totalorder %s33, 1
      %p182 = por %p180, %p181
      %p184 = scmp.ne.s32.totalorder %s169, %s183
      %p185 = scmp.eq.s32.totalorder %s33, 0
      %p186 = por %p184, %p185
      %s187 = ssub.s32 %s27, %s34
      %p188 = scmp.eq.s32.totalorder %s187, 0
      %s190 = sadd.s32 %s189, 1
      %s191 = scalar_select %p188, %s189, %s190
      %p194 = pneg %p188
      %p195 = scmp.eq.s32.totalorder %s27, 1
      %p196 = por %p194, %p195
      %p197 = scmp.ne.s32.totalorder %s189, %s192
      %p198 = scmp.eq.s32.totalorder %s27, 0
      %p199 = por %p197, %p198
      %p200 = scmp.ne.s32.totalorder %s189, %s192
      %p201 = scmp.eq.s32.totalorder %s32, 1
      %p202 = por %p200, %p201
      %p203 = scmp.ne.s32.totalorder %s192, %s193
      %p204 = scmp.eq.s32.totalorder %s32, 0
      %p205 = por %p203, %p204
      %p206 = scmp.ne.s32.totalorder %s192, %s193
      %p207 = scmp.eq.s32.totalorder %s33, 1
      %p208 = por %p206, %p207
      %p210 = scmp.ne.s32.totalorder %s193, %s209
      %p211 = scmp.eq.s32.totalorder %s33, 0
      %p212 = por %p210, %p211
      %s213 = ssub.s32 %s27, %s34
      %p214 = scmp.eq.s32.totalorder %s213, 0
      %s216 = sadd.s32 %s215, 1
      %s217 = scalar_select %p214, %s215, %s216
      %p220 = pneg %p214
      %p221 = scmp.eq.s32.totalorder %s27, 1
      %p222 = por %p220, %p221
      %p223 = scmp.ne.s32.totalorder %s215, %s218
      %p224 = scmp.eq.s32.totalorder %s27, 0
      %p225 = por %p223, %p224
      %p226 = scmp.ne.s32.totalorder %s215, %s218
      %p227 = scmp.eq.s32.totalorder %s32, 1
      %p228 = por %p226, %p227
      %p229 = scmp.ne.s32.totalorder %s218, %s219
      %p230 = scmp.eq.s32.totalorder %s32, 0
      %p231 = por %p229, %p230
      %p232 = scmp.ne.s32.totalorder %s218, %s219
      %p233 = scmp.eq.s32.totalorder %s33, 1
      %p234 = por %p232, %p233
      %p236 = scmp.ne.s32.totalorder %s219, %s235
      %p237 = scmp.eq.s32.totalorder %s33, 0
      %p238 = por %p236, %p237
      %p239 = scmp.le.s32.totalorder 1, %s27
      %p240 = scmp.lt.s32.totalorder %s27, 3
      %p241 = pnand %p239, %p240
      %p242 = pneg %p241
      // Predicated region
      $region9: #{tpu_custom_call.1} parent=5 // pred_check
        _
      $region10: #{tpu_custom_call.1} parent=5 // pred_check_branch
        %244 = sbr.rel (%p241) target = $region12
      $region11: #{tpu_custom_call.1} parent=5 // pred_region
        %s245 = ssub.s32 %s27, 1
        // Predicated region
        $region13: #{tpu_custom_call.1} parent=11 // pred_check
          %p246 = pneg %p74
        $region14: #{tpu_custom_call.1} parent=11 // pred_check_branch
          %248 = sbr.rel (%p246) target = $region16
        $region15: #{tpu_custom_call.1} parent=11 // pred_region
          %250 = vsyncadd [#allocation6], 0
          %s251 = sshll.u32 %s1, 4
          %s252 = int_to_ptr.hbm [resolvable:$true] %s251
          %s253 = sshll.u32 [#allocation5], 4
          %s254 = int_to_ptr.vmem [resolvable:$true] %s253
          %259 = dma.hbm_to_vmem [thread:$0]  %s252, 256, %s254, [#allocation6], 128, 128, 8
        $region16: #{tpu_custom_call.1} parent=11 // pred_fallthru
          _
        // Predicated region
        $region17: #{tpu_custom_call.1} parent=11 // pred_check
          %p260 = pneg %p95
        $region18: #{tpu_custom_call.1} parent=11 // pred_check_branch
          %262 = sbr.rel (%p260) target = $region20
        $region19: #{tpu_custom_call.1} parent=11 // pred_region
          %264 = vsyncadd [#allocation6], 0
          %s266 = sshll.u32 %s2, 4
          %s267 = int_to_ptr.hbm [resolvable:$true] %s266
          %s268 = sshll.u32 [#allocation7], 4
          %s269 = int_to_ptr.vmem [resolvable:$true] %s268
          %271 = dma.hbm_to_vmem [thread:$0]  %s267, 128, %s269, [#allocation6]
        $region20: #{tpu_custom_call.1} parent=11 // pred_fallthru
          _
        // Predicated region
        $region21: #{tpu_custom_call.1} parent=11 // pred_check
          %p272 = pneg %p116
        $region22: #{tpu_custom_call.1} parent=11 // pred_check_branch
          %274 = sbr.rel (%p272) target = $region24
        $region23: #{tpu_custom_call.1} parent=11 // pred_region
          %276 = vsyncadd [#allocation9], 0
          %s277 = sshll.u32 %s3, 4
          %s278 = int_to_ptr.hbm [resolvable:$true] %s277
          %s279 = sshll.u32 [#allocation8], 4
          %s280 = int_to_ptr.vmem [resolvable:$true] %s279
          %285 = dma.hbm_to_vmem [thread:$0]  %s278, 512, %s280, [#allocation9], 128, 128, 8
        $region24: #{tpu_custom_call.1} parent=11 // pred_fallthru
          _
        // Predicated region
        $region25: #{tpu_custom_call.1} parent=11 // pred_check
          %p286 = pneg %p137
        $region26: #{tpu_custom_call.1} parent=11 // pred_check_branch
          %288 = sbr.rel (%p286) target = $region28
        $region27: #{tpu_custom_call.1} parent=11 // pred_region
          %290 = vsyncadd [#allocation9], 0
          %s291 = sshll.u32 %s4, 4
          %s292 = int_to_ptr.hbm [resolvable:$true] %s291
          %s293 = sshll.u32 [#allocation10], 4
          %s294 = int_to_ptr.vmem [resolvable:$true] %s293
          %299 = dma.hbm_to_vmem [thread:$0]  %s292, 256, %s294, [#allocation9], 128, 128, 8
        $region28: #{tpu_custom_call.1} parent=11 // pred_fallthru
          _
        // Predicated region
        $region29: #{tpu_custom_call.1} parent=11 // pred_check
          %p300 = pneg %p158
        $region30: #{tpu_custom_call.1} parent=11 // pred_check_branch
          %302 = sbr.rel (%p300) target = $region32
        $region31: #{tpu_custom_call.1} parent=11 // pred_region
          %304 = vsyncadd [#allocation12], 0
          %s305 = sshll.u32 %s5, 4
          %s306 = int_to_ptr.hbm [resolvable:$true] %s305
          %s307 = sshll.u32 [#allocation11], 4
          %s308 = int_to_ptr.vmem [resolvable:$true] %s307
          %313 = dma.hbm_to_vmem [thread:$0]  %s306, 256, %s308, [#allocation12], 128, 128, 8
        $region32: #{tpu_custom_call.1} parent=11 // pred_fallthru
          _
        // Predicated region
        $region33: #{tpu_custom_call.1} parent=11 // pred_check
          %p314 = pneg %p179
        $region34: #{tpu_custom_call.1} parent=11 // pred_check_branch
          %316 = sbr.rel (%p314) target = $region36
        $region35: #{tpu_custom_call.1} parent=11 // pred_region
          _
        $region36: #{tpu_custom_call.1} parent=11 // pred_fallthru
          _
      $region12: #{tpu_custom_call.1} parent=5 // pred_fallthru
        _
      %p317 = scmp.lt.s32.totalorder %s27, 2
      // Predicated region
      $region37: #{tpu_custom_call.1} parent=5 // pred_check
        %p318 = pneg %p317
      $region38: #{tpu_custom_call.1} parent=5 // pred_check_branch
        %320 = sbr.rel (%p318) target = $region40
      $region39: #{tpu_custom_call.1} parent=5 // pred_region
        // Predicated region
        $region41: #{tpu_custom_call.1} parent=39 // pred_check
          %p321 = pneg %p47
        $region42: #{tpu_custom_call.1} parent=39 // pred_check_branch
          %323 = sbr.rel (%p321) target = $region44
        $region43: #{tpu_custom_call.1} parent=39 // pred_region
          %s324 = sand.u32 %s37, 1
          %s325 = scalar_lea.sflag [#allocation3], %s324
          %s326 = sand.u32 %s37, 1
          %s327 = scalar_lea.vmem [#allocation2], %s326
          %329 = vsyncadd %s325, 0
          %s330 = scalar_lea.hbm %s0, %s27
          %s332 = sshll.u32 %s330, 4
          %s333 = int_to_ptr.hbm [resolvable:$true] %s332
          %s334 = sshll.u32 %s327, 4
          %s335 = int_to_ptr.vmem [resolvable:$true] %s334
          %337 = dma.hbm_to_vmem [thread:$0]  %s333, 16, %s335, %s325
        $region44: #{tpu_custom_call.1} parent=39 // pred_fallthru
          _
      $region40: #{tpu_custom_call.1} parent=5 // pred_fallthru
        _
      %p338 = scmp.le.s32.totalorder 1, %s27
      %p339 = scmp.lt.s32.totalorder %s27, 3
      %p340 = pnand %p338, %p339
      %p341 = pneg %p340
      // Predicated region
      $region45: #{tpu_custom_call.1} parent=5 // pred_check
        _
      $region46: #{tpu_custom_call.1} parent=5 // pred_check_branch
        %343 = sbr.rel (%p340) target = $region48
      $region47: #{tpu_custom_call.1} parent=5 // pred_region
        %s344 = ssub.s32 %s27, 1
        %s345 = sand.u32 %s40, 1
        %s346 = scalar_lea.sflag [#allocation3], %s345
        %s347 = sand.u32 %s40, 1
        %s348 = scalar_lea.vmem [#allocation2], %s347
        // Predicated region
        $region49: #{tpu_custom_call.1} parent=47 // pred_check
          %p349 = pneg %p53
        $region50: #{tpu_custom_call.1} parent=47 // pred_check_branch
          %351 = sbr.rel (%p349) target = $region52
        $region51: #{tpu_custom_call.1} parent=47 // pred_region
          %353 = dma.done %s346, 16
        $region52: #{tpu_custom_call.1} parent=47 // pred_fallthru
          _
        // Predicated region
        $region53: #{tpu_custom_call.1} parent=47 // pred_check
          %p354 = pneg %p74
        $region54: #{tpu_custom_call.1} parent=47 // pred_check_branch
          %356 = sbr.rel (%p354) target = $region56
        $region55: #{tpu_custom_call.1} parent=47 // pred_region
          %358 = dma.done [#allocation6], 256
        $region56: #{tpu_custom_call.1} parent=47 // pred_fallthru
          _
        // Predicated region
        $region57: #{tpu_custom_call.1} parent=47 // pred_check
          %p359 = pneg %p95
        $region58: #{tpu_custom_call.1} parent=47 // pred_check_branch
          %361 = sbr.rel (%p359) target = $region60
        $region59: #{tpu_custom_call.1} parent=47 // pred_region
          %363 = dma.done [#allocation6], 128
        $region60: #{tpu_custom_call.1} parent=47 // pred_fallthru
          _
        // Predicated region
        $region61: #{tpu_custom_call.1} parent=47 // pred_check
          %p364 = pneg %p116
        $region62: #{tpu_custom_call.1} parent=47 // pred_check_branch
          %366 = sbr.rel (%p364) target = $region64
        $region63: #{tpu_custom_call.1} parent=47 // pred_region
          %368 = dma.done [#allocation9], 512
        $region64: #{tpu_custom_call.1} parent=47 // pred_fallthru
          _
        // Predicated region
        $region65: #{tpu_custom_call.1} parent=47 // pred_check
          %p369 = pneg %p137
        $region66: #{tpu_custom_call.1} parent=47 // pred_check_branch
          %371 = sbr.rel (%p369) target = $region68
        $region67: #{tpu_custom_call.1} parent=47 // pred_region
          %373 = dma.done [#allocation9], 256
        $region68: #{tpu_custom_call.1} parent=47 // pred_fallthru
          _
        // Predicated region
        $region69: #{tpu_custom_call.1} parent=47 // pred_check
          %p374 = pneg %p158
        $region70: #{tpu_custom_call.1} parent=47 // pred_check_branch
          %376 = sbr.rel (%p374) target = $region72
        $region71: #{tpu_custom_call.1} parent=47 // pred_region
          %378 = dma.done [#allocation12], 256
        $region72: #{tpu_custom_call.1} parent=47 // pred_fallthru
          _
        %s379 = sand.u32 %s40, 1
        %s380 = scalar_lea.sflag [#allocation3], %s379
        %s381 = sand.u32 %s40, 1
        %s382 = scalar_lea.vmem [#allocation2], %s381
        %p383 = pneg %p53
        %p384 = pneg %p50
        %p385 = pneg %p74
        %p386 = pneg %p71
        %p387 = pneg %p95
        %p388 = pneg %p92
        %p389 = pneg %p116
        %p390 = pneg %p113
        %p391 = pneg %p137
        %p392 = pneg %p134
        %p393 = pneg %p158
        %p394 = pneg %p155
        %p395 = pneg %p179
        %p396 = pneg %p176
        %p397 = pneg %p205
        %p398 = pneg %p202
        %s399 = sand.u32 %s192, 1
        %s400 = scalar_lea.sflag [#allocation4], %s399
        %s401 = sand.u32 %s192, 1
        %s402 = smul.addr %s401, 16
        %s403 = scalar_lea.vmem [#allocation13], %s402
        %p404 = pneg %p231
        %p405 = pneg %p228
        %s406 = sand.u32 %s218, 1
        %s407 = scalar_lea.sflag [#allocation15], %s406
        %s408 = sand.u32 %s218, 1
        %s409 = smul.addr %s408, 32
        %s410 = scalar_lea.vmem [#allocation14], %s409
        %s411 = smul.u32 2, %s32
        %s412 = smul.u32 2, %s32
        %v413 = vld [vmem:[%s348] sm:$0x1]
        %v414 = vlaneseq
        %v415 = vshrl.u32 %v414, 7
        %v416 = vadd.s32 %v415, 8
        %v417 = vperm.slane %v413, 0
        %vm418 = vcmp.eq.s32.totalorder %v415, %v417
        %vm419 = vcmp.eq.s32.totalorder %v416, %v417
        %v420 = vsel %vm418, 1, 0
        %v421 = vsel %vm419, 1, 0
        %v422 = vcvt.s32.f32 %v420
        %v423 = vcvt.s32.f32 %v421
        %v424 = vld [vmem:[#allocation5] sm:$0xff]
        %v425 = vld [vmem:[#allocation5 + $0x8] sm:$0x3]
        %v426 = vld [vmem:[#allocation7] sm:$0xff]
        %427 = vxpose.xlu0.b32.start [1/16] %v422, 128
        %428 = vxpose.xlu0.b32.cont [2/16] %v423, 128
        %429 = vxpose.xlu0.b32.cont [3/16] 0.0, 128
        %430 = vxpose.xlu0.b32.cont [4/16] 0.0, 128
        %431 = vxpose.xlu0.b32.cont [5/16] 0.0, 128
        %432 = vxpose.xlu0.b32.cont [6/16] 0.0, 128
        %433 = vxpose.xlu0.b32.cont [7/16] 0.0, 128
        %434 = vxpose.xlu0.b32.cont [8/16] 0.0, 128
        %435 = vxpose.xlu0.b32.cont [9/16] 0.0, 128
        %436 = vxpose.xlu0.b32.cont [10/16] 0.0, 128
        %437 = vxpose.xlu0.b32.cont [11/16] 0.0, 128
        %438 = vxpose.xlu0.b32.cont [12/16] 0.0, 128
        %439 = vxpose.xlu0.b32.cont [13/16] 0.0, 128
        %440 = vxpose.xlu0.b32.cont [14/16] 0.0, 128
        %441 = vxpose.xlu0.b32.cont [15/16] 0.0, 128
        %442 = vxpose.xlu0.b32.end [16/16] 0.0, 128
        %v443 = vpop.trf.xlu0
        %v444 = vpop.trf.xlu0
        %v445 = vpop.trf.xlu0
        %v446 = vpop.trf.xlu0
        %v447 = vpop.trf.xlu0
        %v448 = vpop.trf.xlu0
        %v449 = vpop.trf.xlu0
        %v450 = vpop.trf.xlu0
        %v451 = vpop.trf.xlu0
        %v452 = vpop.trf.xlu0
        %v453 = vpop.trf.xlu0
        %v454 = vpop.trf.xlu0
        %v455 = vpop.trf.xlu0
        %v456 = vpop.trf.xlu0
        %v457 = vpop.trf.xlu0
        %v458 = vpop.trf.xlu0
        %vm459 = vcmask 80896
        %v461 = vsel %vm459, %v443, 0
        %v464 = vsel %vm459, %v444, 0
        %vm466 = vcmask 1041408
        %v468 = vsel %vm466, %v425, 0
        %470 = vmatpush.msra.mxu0 0.0
        %471 = vmatpush.msra.mxu0 0.0
        %472 = vmatpush.msra.mxu0 0.0
        %473 = vmatpush.msra.mxu0 0.0
        %474 = vmatpush.msra.mxu0 0.0
        %475 = vmatpush.msra.mxu0 0.0
        %476 = vmatpush.msra.mxu0 0.0
        %477 = vmatpush.msra.mxu0 0.0
        %478 = vmatpush.msra.mxu0 0.0
        %479 = vmatpush.msra.mxu0 0.0
        %480 = vmatpush.msra.mxu0 0.0
        %481 = vmatpush.msra.mxu0 0.0
        %482 = vmatpush.msra.mxu0 0.0
        %483 = vmatpush.msra.mxu0 0.0
        %484 = vmatpush.msra.mxu0 %v468
        %485 = vmatpush.msra.mxu0 %v424
        %486 = vmatmul.f32.gmra.mxu0 %v461
        %v487 = vpop.f32.mrf.mxu0
        %v488 = vadd.f32 %v426, %v487
        %489 = vmatmul.f32.gmra.mxu0 %v464
        %v490 = vpop.f32.mrf.mxu0
        %v491 = vadd.f32 %v426, %v490
        %492 = vdwg.mxu0
        %v493 = vld [vmem:[#allocation8] sm:$0xff]
        %v494 = vld [vmem:[#allocation8 + $0x8] sm:$0xff]
        %v495 = vld [vmem:[#allocation8 + $0x10] sm:$0xff]
        %v496 = vld [vmem:[#allocation8 + $0x18] sm:$0xff]
        %vm497 = vcmask 261120
        %v499 = vsel %vm497, %v488, 0
        %v502 = vsel %vm497, %v491, 0
        %504 = vmatpush.msra.mxu0 0.0
        %505 = vmatpush.msra.mxu0 0.0
        %506 = vmatpush.msra.mxu0 0.0
        %507 = vmatpush.msra.mxu0 0.0
        %508 = vmatpush.msra.mxu0 0.0
        %509 = vmatpush.msra.mxu0 0.0
        %510 = vmatpush.msra.mxu0 0.0
        %511 = vmatpush.msra.mxu0 0.0
        %512 = vmatpush.msra.mxu0 0.0
        %513 = vmatpush.msra.mxu0 0.0
        %514 = vmatpush.msra.mxu0 0.0
        %515 = vmatpush.msra.mxu0 0.0
        %516 = vmatpush.msra.mxu0 %v496
        %517 = vmatpush.msra.mxu0 %v495
        %518 = vmatpush.msra.mxu0 %v494
        %519 = vmatpush.msra.mxu0 %v493
        %520 = vmatmul.f32.gmra.mxu0 %v499
        %v521 = vpop.f32.mrf.mxu0
        %v522 = vadd.f32 0.0, %v521
        %523 = vmatmul.f32.gmra.mxu0 %v502
        %v524 = vpop.f32.mrf.mxu0
        %v525 = vadd.f32 0.0, %v524
        %526 = vdwg.mxu0
        %527 = vxpose.xlu0.b32.start [1/16] %v522, 128
        %528 = vxpose.xlu0.b32.cont [2/16] 0.0, 128
        %529 = vxpose.xlu0.b32.cont [3/16] 0.0, 128
        %530 = vxpose.xlu0.b32.cont [4/16] 0.0, 128
        %531 = vxpose.xlu0.b32.cont [5/16] 0.0, 128
        %532 = vxpose.xlu0.b32.cont [6/16] 0.0, 128
        %533 = vxpose.xlu0.b32.cont [7/16] 0.0, 128
        %534 = vxpose.xlu0.b32.cont [8/16] 0.0, 128
        %535 = vxpose.xlu0.b32.cont [9/16] 0.0, 128
        %536 = vxpose.xlu0.b32.cont [10/16] 0.0, 128
        %537 = vxpose.xlu0.b32.cont [11/16] 0.0, 128
        %538 = vxpose.xlu0.b32.cont [12/16] 0.0, 128
        %539 = vxpose.xlu0.b32.cont [13/16] 0.0, 128
        %540 = vxpose.xlu0.b32.cont [14/16] 0.0, 128
        %541 = vxpose.xlu0.b32.cont [15/16] 0.0, 128
        %542 = vxpose.xlu0.b32.end [16/16] 0.0, 128
        %v543 = vpop.trf.xlu0
        %v544 = vpop.trf.xlu0
        %v545 = vpop.trf.xlu0
        %v546 = vpop.trf.xlu0
        %v547 = vpop.trf.xlu0
        %v548 = vpop.trf.xlu0
        %v549 = vpop.trf.xlu0
        %v550 = vpop.trf.xlu0
        %v551 = vpop.trf.xlu0
        %v552 = vpop.trf.xlu0
        %v553 = vpop.trf.xlu0
        %v554 = vpop.trf.xlu0
        %v555 = vpop.trf.xlu0
        %v556 = vpop.trf.xlu0
        %v557 = vpop.trf.xlu0
        %v558 = vpop.trf.xlu0
        %560 = vrot.lane.b32.xlu0 %v522, 112
        %v561 = vpop.permute.xlu0 %560
        %vm563 = vcmask 64512
        %v565 = vsel %vm563, %v543, 0
        %v568 = vsel %vm563, %v544, 0
        %570 = vmatpush.msra.mxu0 0.0
        %571 = vmatpush.msra.mxu0 0.0
        %572 = vmatpush.msra.mxu0 0.0
        %573 = vmatpush.msra.mxu0 0.0
        %574 = vmatpush.msra.mxu0 0.0
        %575 = vmatpush.msra.mxu0 0.0
        %576 = vmatpush.msra.mxu0 0.0
        %577 = vmatpush.msra.mxu0 0.0
        %578 = vmatpush.msra.mxu0 0.0
        %579 = vmatpush.msra.mxu0 0.0
        %580 = vmatpush.msra.mxu0 0.0
        %581 = vmatpush.msra.mxu0 0.0
        %582 = vmatpush.msra.mxu0 0.0
        %583 = vmatpush.msra.mxu0 0.0
        %584 = vmatpush.msra.mxu0 0.0
        %585 = vmatpush.msra.mxu0 %v561
        %586 = vmatmul.f32.gmra.mxu0 %v565
        %v587 = vpop.f32.mrf.mxu0
        %v588 = vadd.f32 0.0, %v587
        %589 = vmatmul.f32.gmra.mxu0 %v568
        %v590 = vpop.f32.mrf.mxu0
        %v591 = vadd.f32 0.0, %v590
        %592 = vdwg.mxu0
        %v593 = vmul.f32 %v588, 0.17677669
        %v594 = vmul.f32 %v591, 0.17677669
        %vm595 = vcmask 130048
        %v596 = vsel %vm595, %v593, -inf
        %597 = vmax.xlane.f32.xlu0 %v596
        %v598 = vpop.xlane.xlu0 %597
        %v599 = vsel %vm595, %v594, -inf
        %600 = vmax.xlane.f32.xlu0 %v599
        %v601 = vpop.xlane.xlu0 %600
        %v602 = vsub.f32 %v593, %v598
        %v603 = vsub.f32 %v594, %v601
        %v604 = vmul.f32 %v602, 1.442695
        %v605 = vpow.pop %v604
        %v606 = vmul.f32 %v603, 1.442695
        %v607 = vpow.pop %v606
        %v608 = vsel %vm595, %v605, 0.0
        %609 = vadd.xlane.f32.xlu0 %v608
        %v610 = vpop.xlane.xlu0 %609
        %v611 = vsel %vm595, %v607, 0.0
        %612 = vadd.xlane.f32.xlu0 %v611
        %v613 = vpop.xlane.xlu0 %612
        %v614 = vrcp.pop %v610
        %v615 = vmul.f32 %v610, %v614
        %v616 = vsub.f32 1.0, %v615
        %v617 = vmul.f32 %v614, %v616
        %v618 = vadd.f32 %v614, %v617
        %vm619 = vweird.f32 %v610
        %vm620 = vweird.f32 %v614
        %vm621 = vmor %vm619, %vm620
        %v622 = vsel %vm621, %v614, %v618
        %v623 = vand.u32 2147483647, %v610
        %vm624 = vcmp.eq.f32.partialorder %v623, 8.507059e+37
        %v625 = vand.u32 %v610, 2147483648
        %v626 = vor.u32 1.1754944e-38, %v625
        %v627 = vsel %vm624, %v626, %v622
        %v628 = vrcp.pop %v613
        %v629 = vmul.f32 %v613, %v628
        %v630 = vsub.f32 1.0, %v629
        %v631 = vmul.f32 %v628, %v630
        %v632 = vadd.f32 %v628, %v631
        %vm633 = vweird.f32 %v613
        %vm634 = vweird.f32 %v628
        %vm635 = vmor %vm633, %vm634
        %v636 = vsel %vm635, %v628, %v632
        %v637 = vand.u32 2147483647, %v613
        %vm638 = vcmp.eq.f32.partialorder %v637, 8.507059e+37
        %v639 = vand.u32 %v613, 2147483648
        %v640 = vor.u32 1.1754944e-38, %v639
        %v641 = vsel %vm638, %v640, %v636
        %v642 = vmul.f32 %v605, %v627
        %v643 = vmul.f32 %v607, %v641
        %644 = vrot.lane.b32.xlu0 %v522, 96
        %v645 = vpop.permute.xlu0 %644
        %v647 = vsel %vm595, %v642, 0
        %v650 = vsel %vm595, %v643, 0
        %v652 = vsel %vm595, %v645, 0
        %654 = vmatpush.xpose.msra.mxu0 0.0
        %655 = vmatpush.xpose.msra.mxu0 0.0
        %656 = vmatpush.xpose.msra.mxu0 0.0
        %657 = vmatpush.xpose.msra.mxu0 0.0
        %658 = vmatpush.xpose.msra.mxu0 0.0
        %659 = vmatpush.xpose.msra.mxu0 0.0
        %660 = vmatpush.xpose.msra.mxu0 0.0
        %661 = vmatpush.xpose.msra.mxu0 0.0
        %662 = vmatpush.xpose.msra.mxu0 0.0
        %663 = vmatpush.xpose.msra.mxu0 0.0
        %664 = vmatpush.xpose.msra.mxu0 0.0
        %665 = vmatpush.xpose.msra.mxu0 0.0
        %666 = vmatpush.xpose.msra.mxu0 0.0
        %667 = vmatpush.xpose.msra.mxu0 0.0
        %668 = vmatpush.xpose.msra.mxu0 0.0
        %669 = vmatpush.xpose.msra.mxu0 %v652
        %670 = vmatmul.f32.gmra.mxu0 %v647
        %v671 = vpop.f32.mrf.mxu0
        %v672 = vadd.f32 0.0, %v671
        %673 = vmatmul.f32.gmra.mxu0 %v650
        %v674 = vpop.f32.mrf.mxu0
        %v675 = vadd.f32 0.0, %v674
        %676 = vdwg.mxu0
        %v677 = vsel %vm563, %v672, 0.0
        %v678 = vsel %vm563, %v675, 0.0
        %679 = vst [vmem:[%s410] sm:$0xff] %v677
        %680 = vst [vmem:[%s410 + $0x8] sm:$0xff] %v678
        %681 = vmatpush.xpose.msra.mxu0 0.0
        %682 = vmatpush.xpose.msra.mxu0 0.0
        %683 = vmatpush.xpose.msra.mxu0 0.0
        %684 = vmatpush.xpose.msra.mxu0 0.0
        %685 = vmatpush.xpose.msra.mxu0 0.0
        %686 = vmatpush.xpose.msra.mxu0 0.0
        %687 = vmatpush.xpose.msra.mxu0 0.0
        %688 = vmatpush.xpose.msra.mxu0 0.0
        %689 = vmatpush.xpose.msra.mxu0 0.0
        %690 = vmatpush.xpose.msra.mxu0 0.0
        %691 = vmatpush.xpose.msra.mxu0 0.0
        %692 = vmatpush.xpose.msra.mxu0 0.0
        %693 = vmatpush.xpose.msra.mxu0 0.0
        %694 = vmatpush.xpose.msra.mxu0 0.0
        %695 = vmatpush.xpose.msra.mxu0 %v650
        %696 = vmatpush.xpose.msra.mxu0 %v647
        %697 = vmatmul.f32.gmra.mxu0 %v652
        %v698 = vpop.f32.mrf.mxu0
        %v699 = vadd.f32 0.0, %v698
        %700 = vdwg.mxu0
        %701 = vxpose.xlu0.b32.start [1/16] %v525, 128
        %702 = vxpose.xlu0.b32.cont [2/16] 0.0, 128
        %703 = vxpose.xlu0.b32.cont [3/16] 0.0, 128
        %704 = vxpose.xlu0.b32.cont [4/16] 0.0, 128
        %705 = vxpose.xlu0.b32.cont [5/16] 0.0, 128
        %706 = vxpose.xlu0.b32.cont [6/16] 0.0, 128
        %707 = vxpose.xlu0.b32.cont [7/16] 0.0, 128
        %708 = vxpose.xlu0.b32.cont [8/16] 0.0, 128
        %709 = vxpose.xlu0.b32.cont [9/16] 0.0, 128
        %710 = vxpose.xlu0.b32.cont [10/16] 0.0, 128
        %711 = vxpose.xlu0.b32.cont [11/16] 0.0, 128
        %712 = vxpose.xlu0.b32.cont [12/16] 0.0, 128
        %713 = vxpose.xlu0.b32.cont [13/16] 0.0, 128
        %714 = vxpose.xlu0.b32.cont [14/16] 0.0, 128
        %715 = vxpose.xlu0.b32.cont [15/16] 0.0, 128
        %716 = vxpose.xlu0.b32.end [16/16] 0.0, 128
        %v717 = vpop.trf.xlu0
        %v718 = vpop.trf.xlu0
        %v719 = vpop.trf.xlu0
        %v720 = vpop.trf.xlu0
        %v721 = vpop.trf.xlu0
        %v722 = vpop.trf.xlu0
        %v723 = vpop.trf.xlu0
        %v724 = vpop.trf.xlu0
        %v725 = vpop.trf.xlu0
        %v726 = vpop.trf.xlu0
        %v727 = vpop.trf.xlu0
        %v728 = vpop.trf.xlu0
        %v729 = vpop.trf.xlu0
        %v730 = vpop.trf.xlu0
        %v731 = vpop.trf.xlu0
        %v732 = vpop.trf.xlu0
        %734 = vrot.lane.b32.xlu0 %v525, 112
        %v735 = vpop.permute.xlu0 %734
        %v738 = vsel %vm563, %v717, 0
        %v741 = vsel %vm563, %v718, 0
        %743 = vmatpush.msra.mxu0 0.0
        %744 = vmatpush.msra.mxu0 0.0
        %745 = vmatpush.msra.mxu0 0.0
        %746 = vmatpush.msra.mxu0 0.0
        %747 = vmatpush.msra.mxu0 0.0
        %748 = vmatpush.msra.mxu0 0.0
        %749 = vmatpush.msra.mxu0 0.0
        %750 = vmatpush.msra.mxu0 0.0
        %751 = vmatpush.msra.mxu0 0.0
        %752 = vmatpush.msra.mxu0 0.0
        %753 = vmatpush.msra.mxu0 0.0
        %754 = vmatpush.msra.mxu0 0.0
        %755 = vmatpush.msra.mxu0 0.0
        %756 = vmatpush.msra.mxu0 0.0
        %757 = vmatpush.msra.mxu0 0.0
        %758 = vmatpush.msra.mxu0 %v735
        %759 = vmatmul.f32.gmra.mxu0 %v738
        %v760 = vpop.f32.mrf.mxu0
        %v761 = vadd.f32 0.0, %v760
        %762 = vmatmul.f32.gmra.mxu0 %v741
        %v763 = vpop.f32.mrf.mxu0
        %v764 = vadd.f32 0.0, %v763
        %765 = vdwg.mxu0
        %v766 = vmul.f32 %v761, 0.17677669
        %v767 = vmul.f32 %v764, 0.17677669
        %v768 = vsel %vm595, %v766, -inf
        %769 = vmax.xlane.f32.xlu0 %v768
        %v770 = vpop.xlane.xlu0 %769
        %v771 = vsel %vm595, %v767, -inf
        %772 = vmax.xlane.f32.xlu0 %v771
        %v773 = vpop.xlane.xlu0 %772
        %v774 = vsub.f32 %v766, %v770
        %v775 = vsub.f32 %v767, %v773
        %v776 = vmul.f32 %v774, 1.442695
        %v777 = vpow.pop %v776
        %v778 = vmul.f32 %v775, 1.442695
        %v779 = vpow.pop %v778
        %v780 = vsel %vm595, %v777, 0.0
        %781 = vadd.xlane.f32.xlu0 %v780
        %v782 = vpop.xlane.xlu0 %781
        %v783 = vsel %vm595, %v779, 0.0
        %784 = vadd.xlane.f32.xlu0 %v783
        %v785 = vpop.xlane.xlu0 %784
        %v786 = vrcp.pop %v782
        %v787 = vmul.f32 %v782, %v786
        %v788 = vsub.f32 1.0, %v787
        %v789 = vmul.f32 %v786, %v788
        %v790 = vadd.f32 %v786, %v789
        %vm791 = vweird.f32 %v782
        %vm792 = vweird.f32 %v786
        %vm793 = vmor %vm791, %vm792
        %v794 = vsel %vm793, %v786, %v790
        %v795 = vand.u32 2147483647, %v782
        %vm796 = vcmp.eq.f32.partialorder %v795, 8.507059e+37
        %v797 = vand.u32 %v782, 2147483648
        %v798 = vor.u32 1.1754944e-38, %v797
        %v799 = vsel %vm796, %v798, %v794
        %v800 = vrcp.pop %v785
        %v801 = vmul.f32 %v785, %v800
        %v802 = vsub.f32 1.0, %v801
        %v803 = vmul.f32 %v800, %v802
        %v804 = vadd.f32 %v800, %v803
        %vm805 = vweird.f32 %v785
        %vm806 = vweird.f32 %v800
        %vm807 = vmor %vm805, %vm806
        %v808 = vsel %vm807, %v800, %v804
        %v809 = vand.u32 2147483647, %v785
        %vm810 = vcmp.eq.f32.partialorder %v809, 8.507059e+37
        %v811 = vand.u32 %v785, 2147483648
        %v812 = vor.u32 1.1754944e-38, %v811
        %v813 = vsel %vm810, %v812, %v808
        %v814 = vmul.f32 %v777, %v799
        %v815 = vmul.f32 %v779, %v813
        %816 = vrot.lane.b32.xlu0 %v525, 96
        %v817 = vpop.permute.xlu0 %816
        %v819 = vsel %vm595, %v814, 0
        %v822 = vsel %vm595, %v815, 0
        %v824 = vsel %vm595, %v817, 0
        %826 = vmatpush.xpose.msra.mxu0 0.0
        %827 = vmatpush.xpose.msra.mxu0 0.0
        %828 = vmatpush.xpose.msra.mxu0 0.0
        %829 = vmatpush.xpose.msra.mxu0 0.0
        %830 = vmatpush.xpose.msra.mxu0 0.0
        %831 = vmatpush.xpose.msra.mxu0 0.0
        %832 = vmatpush.xpose.msra.mxu0 0.0
        %833 = vmatpush.xpose.msra.mxu0 0.0
        %834 = vmatpush.xpose.msra.mxu0 0.0
        %835 = vmatpush.xpose.msra.mxu0 0.0
        %836 = vmatpush.xpose.msra.mxu0 0.0
        %837 = vmatpush.xpose.msra.mxu0 0.0
        %838 = vmatpush.xpose.msra.mxu0 0.0
        %839 = vmatpush.xpose.msra.mxu0 0.0
        %840 = vmatpush.xpose.msra.mxu0 0.0
        %841 = vmatpush.xpose.msra.mxu0 %v824
        %842 = vmatmul.f32.gmra.mxu0 %v819
        %v843 = vpop.f32.mrf.mxu0
        %v844 = vadd.f32 0.0, %v843
        %845 = vmatmul.f32.gmra.mxu0 %v822
        %v846 = vpop.f32.mrf.mxu0
        %v847 = vadd.f32 0.0, %v846
        %848 = vdwg.mxu0
        %v849 = vsel %vm563, %v844, 0.0
        %v850 = vsel %vm563, %v847, 0.0
        %s851 = scalar_lea.vmem %s410, 16 [#allocation14]
        %852 = vst [vmem:[%s851] sm:$0xff] %v849
        %853 = vst [vmem:[%s851 + $0x8] sm:$0xff] %v850
        %854 = vmatpush.xpose.msra.mxu0 0.0
        %855 = vmatpush.xpose.msra.mxu0 0.0
        %856 = vmatpush.xpose.msra.mxu0 0.0
        %857 = vmatpush.xpose.msra.mxu0 0.0
        %858 = vmatpush.xpose.msra.mxu0 0.0
        %859 = vmatpush.xpose.msra.mxu0 0.0
        %860 = vmatpush.xpose.msra.mxu0 0.0
        %861 = vmatpush.xpose.msra.mxu0 0.0
        %862 = vmatpush.xpose.msra.mxu0 0.0
        %863 = vmatpush.xpose.msra.mxu0 0.0
        %864 = vmatpush.xpose.msra.mxu0 0.0
        %865 = vmatpush.xpose.msra.mxu0 0.0
        %866 = vmatpush.xpose.msra.mxu0 0.0
        %867 = vmatpush.xpose.msra.mxu0 0.0
        %868 = vmatpush.xpose.msra.mxu0 %v822
        %869 = vmatpush.xpose.msra.mxu0 %v819
        %870 = vmatmul.f32.gmra.mxu0 %v824
        %v871 = vpop.f32.mrf.mxu0
        %v872 = vadd.f32 0.0, %v871
        %873 = vdwg.mxu0
        %v874 = vld [vmem:[%s6] sm:$0x3]
        %v875 = vld [vmem:[#allocation10] sm:$0xff]
        %v876 = vld [vmem:[#allocation10 + $0x8] sm:$0xff]
        %v877 = vperm.slane %v874, 0
        %v879 = vsel %vm595, %v699, 0
        %v882 = vsel %vm595, %v872, 0
        %884 = vmatpush.msra.mxu0 0.0
        %885 = vmatpush.msra.mxu0 0.0
        %886 = vmatpush.msra.mxu0 0.0
        %887 = vmatpush.msra.mxu0 0.0
        %888 = vmatpush.msra.mxu0 0.0
        %889 = vmatpush.msra.mxu0 0.0
        %890 = vmatpush.msra.mxu0 0.0
        %891 = vmatpush.msra.mxu0 0.0
        %892 = vmatpush.msra.mxu0 0.0
        %893 = vmatpush.msra.mxu0 0.0
        %894 = vmatpush.msra.mxu0 0.0
        %895 = vmatpush.msra.mxu0 0.0
        %896 = vmatpush.msra.mxu0 0.0
        %897 = vmatpush.msra.mxu0 0.0
        %898 = vmatpush.msra.mxu0 %v876
        %899 = vmatpush.msra.mxu0 %v875
        %900 = vmatmul.f32.gmra.mxu0 %v879
        %v901 = vpop.f32.mrf.mxu0
        %v902 = vadd.f32 %v877, %v901
        %903 = vmatmul.f32.gmra.mxu0 %v882
        %v904 = vpop.f32.mrf.mxu0
        %v905 = vadd.f32 %v877, %v904
        %906 = vdwg.mxu0
        %v907 = vld [vmem:[#allocation11] sm:$0xff]
        %v908 = vld [vmem:[#allocation11 + $0x8] sm:$0xff]
        %v909 = vperm.slane %v874, 1
        %v911 = vsel %vm595, %v902, 0
        %v914 = vsel %vm595, %v905, 0
        %916 = vmatpush.msra.mxu0 0.0
        %917 = vmatpush.msra.mxu0 0.0
        %918 = vmatpush.msra.mxu0 0.0
        %919 = vmatpush.msra.mxu0 0.0
        %920 = vmatpush.msra.mxu0 0.0
        %921 = vmatpush.msra.mxu0 0.0
        %922 = vmatpush.msra.mxu0 0.0
        %923 = vmatpush.msra.mxu0 0.0
        %924 = vmatpush.msra.mxu0 0.0
        %925 = vmatpush.msra.mxu0 0.0
        %926 = vmatpush.msra.mxu0 0.0
        %927 = vmatpush.msra.mxu0 0.0
        %928 = vmatpush.msra.mxu0 0.0
        %929 = vmatpush.msra.mxu0 0.0
        %930 = vmatpush.msra.mxu0 %v908
        %931 = vmatpush.msra.mxu0 %v907
        %932 = vmatmul.f32.gmra.mxu0 %v911
        %v933 = vpop.f32.mrf.mxu0
        %v934 = vadd.f32 %v909, %v933
        %935 = vmatmul.f32.gmra.mxu0 %v914
        %v936 = vpop.f32.mrf.mxu0
        %v937 = vadd.f32 %v909, %v936
        %938 = vdwg.mxu0
        %939 = vmax.xlane.f32.xlu0 %v934
        %v940 = vpop.xlane.xlu0 %939
        %941 = vmax.xlane.f32.xlu0 %v937
        %v942 = vpop.xlane.xlu0 %941
        %v943 = vsub.f32 %v934, %v940
        %v944 = vsub.f32 %v937, %v942
        %v945 = vmul.f32 %v943, 1.442695
        %v946 = vpow.pop %v945
        %v947 = vmul.f32 %v944, 1.442695
        %v948 = vpow.pop %v947
        %949 = vadd.xlane.f32.xlu0 %v946
        %v950 = vpop.xlane.xlu0 %949
        %951 = vadd.xlane.f32.xlu0 %v948
        %v952 = vpop.xlane.xlu0 %951
        %v953 = vlog2.pop %v950
        %v954 = vmul.f32 %v953, 0.6931472
        %v955 = vlog2.pop %v952
        %v956 = vmul.f32 %v955, 0.6931472
        %v957 = vsub.f32 %v943, %v954
        %v958 = vsub.f32 %v944, %v956
        %959 = vst [vmem:[%s403] sm:$0xff] %v957
        %960 = vst [vmem:[%s403 + $0x8] sm:$0xff] %v958
        %s961 = sand.u32 %s192, 1
        %s962 = scalar_lea.sflag [#allocation4], %s961
        %s963 = sand.u32 %s192, 1
        %s964 = smul.addr %s963, 16
        %s965 = scalar_lea.vmem [#allocation13], %s964
        %s966 = sand.u32 %s218, 1
        %s967 = scalar_lea.sflag [#allocation15], %s966
        %s968 = sand.u32 %s218, 1
        %s969 = smul.addr %s968, 32
        %s970 = scalar_lea.vmem [#allocation14], %s969
        // Predicated region
        $region73: #{tpu_custom_call.1} parent=47 // pred_check
          %p971 = pneg %p202
        $region74: #{tpu_custom_call.1} parent=47 // pred_check_branch
          %973 = sbr.rel (%p971) target = $region76
        $region75: #{tpu_custom_call.1} parent=47 // pred_region
          %s974 = smul.u32 2, %s32
          %976 = vsyncadd %s962, 0
          %s977 = smul.addr %s974, 8
          %s978 = scalar_lea.hbm %s7, %s977
          %s979 = sshll.u32 %s965, 4
          %s980 = int_to_ptr.vmem [resolvable:$true] %s979
          %s981 = sshll.u32 %s978, 4
          %s982 = int_to_ptr.hbm [resolvable:$true] %s981
          %987 = dma.vmem_to_hbm [thread:$0]  %s980, 256, %s982, %s962, 128, 128, 8
        $region76: #{tpu_custom_call.1} parent=47 // pred_fallthru
          _
        // Predicated region
        $region77: #{tpu_custom_call.1} parent=47 // pred_check
          %p988 = pneg %p228
        $region78: #{tpu_custom_call.1} parent=47 // pred_check_branch
          %990 = sbr.rel (%p988) target = $region80
        $region79: #{tpu_custom_call.1} parent=47 // pred_region
          %s991 = smul.u32 2, %s32
          %993 = vsyncadd %s967, 0
          %s994 = smul.addr %s991, 2
          %s995 = smul.addr %s994, 8
          %s996 = scalar_lea.hbm %s8, %s995
          %s997 = sshll.u32 %s970, 4
          %s998 = int_to_ptr.vmem [resolvable:$true] %s997
          %s999 = sshll.u32 %s996, 4
          %s1000 = int_to_ptr.hbm [resolvable:$true] %s999
          %1005 = dma.vmem_to_hbm [thread:$0]  %s998, 512, %s1000, %s967, 128, 128, 8
        $region80: #{tpu_custom_call.1} parent=47 // pred_fallthru
          _
      $region48: #{tpu_custom_call.1} parent=5 // pred_fallthru
        _
      %p1006 = scmp.le.s32.totalorder 2, %s27
      // Predicated region
      $region81: #{tpu_custom_call.1} parent=5 // pred_check
        %p1007 = pneg %p1006
      $region82: #{tpu_custom_call.1} parent=5 // pred_check_branch
        %1009 = sbr.rel (%p1007) target = $region84
      $region83: #{tpu_custom_call.1} parent=5 // pred_region
        %s1010 = ssub.s32 %s27, 2
        // Predicated region
        $region85: #{tpu_custom_call.1} parent=83 // pred_check
          %p1011 = pneg %p208
        $region86: #{tpu_custom_call.1} parent=83 // pred_check_branch
          %1013 = sbr.rel (%p1011) target = $region88
        $region87: #{tpu_custom_call.1} parent=83 // pred_region
          %s1014 = sand.u32 %s193, 1
          %s1015 = scalar_lea.sflag [#allocation4], %s1014
          %s1016 = sand.u32 %s193, 1
          %s1017 = smul.addr %s1016, 16
          %s1018 = scalar_lea.vmem [#allocation13], %s1017
          %1020 = dma.done %s1015, 256
        $region88: #{tpu_custom_call.1} parent=83 // pred_fallthru
          _
        // Predicated region
        $region89: #{tpu_custom_call.1} parent=83 // pred_check
          %p1021 = pneg %p234
        $region90: #{tpu_custom_call.1} parent=83 // pred_check_branch
          %1023 = sbr.rel (%p1021) target = $region92
        $region91: #{tpu_custom_call.1} parent=83 // pred_region
          %s1024 = sand.u32 %s219, 1
          %s1025 = scalar_lea.sflag [#allocation15], %s1024
          %s1026 = sand.u32 %s219, 1
          %s1027 = smul.addr %s1026, 32
          %s1028 = scalar_lea.vmem [#allocation14], %s1027
          %1030 = dma.done %s1025, 512
        $region92: #{tpu_custom_call.1} parent=83 // pred_fallthru
          _
      $region84: #{tpu_custom_call.1} parent=5 // pred_fallthru
        _
    $region6: #{tpu_custom_call.1} parent=1 // loop_footer
      %s31 = sadd.s32 1, %s27
    $region7: #{tpu_custom_call.1} parent=1 // loop_footer_branch
      %26 = sbr.rel target = $region3
    $region8: #{tpu_custom_call.1} parent=1 // loop_exit
      _
    %1031 = vsyncpa [#allocation3], 1
    %s1032 = scalar_lea.sflag [#allocation3], 1
    %1033 = vsyncpa %s1032, 1
    %1034 = vsyncpa [#allocation6], 1
    %1035 = vsyncpa [#allocation9], 1
    %1036 = vsyncpa [#allocation12], 1
    %1037 = vsyncpa [#allocation4], 1
    %s1038 = scalar_lea.sflag [#allocation4], 1
    %1039 = vsyncpa %s1038, 1
    %1040 = vsyncpa [#allocation15], 1
    %s1041 = scalar_lea.sflag [#allocation15], 1
    %1042 = vsyncpa %s1041, 1

</llo_original>
